<compile_context>
chip_gen: v5e
topology: v5e:2x2
jax: 0.10.0
libtpu: 0.0.40
codegen_flags: <defaults>
</compile_context>

<pallas_src>
import jax
import jax.numpy as jnp
from jax import lax
from jax.experimental import pallas as pl
from jax.experimental.pallas import tpu as pltpu


def _round_up(a, b):
    return ((a + b - 1) // b) * b


def _choose_tile_m(M, Cin, Cout, tile_m, vmem_budget=24 * 1024 * 1024):
    # pass-2 double-buffered working set ~ 2 * (Cin + Cout) * tm * 4 bytes
    max_tm = vmem_budget // (8 * (Cin + Cout))
    max_tm = max(128, (max_tm // 128) * 128)
    tm = min(tile_m, max_tm, _round_up(M, 128))
    return max(128, (tm // 128) * 128)


def _stats_kernel(x_ref, sx_ref, sxx_ref):
    # x_ref: (Cin, tm).  Emit per-block partial sum(x) and Gram matrix x x^T.
    x = x_ref[...]
    sx_ref[...] = jnp.sum(x, axis=1)[None, None, :]            # (1, 1, Cin)
    sxx_ref[...] = lax.dot_general(                            # (1, Cin, Cin)
        x, x,
        dimension_numbers=(((1,), (1,)), ((), ())),
        preferred_element_type=jnp.float32)[None, ...]


def _conv_bn_kernel(x_ref, w_ref, shift_ref, o_ref):
    # BN scale already folded into w; just matmul + per-channel bias.
    y = lax.dot_general(
        w_ref[...], x_ref[...],
        dimension_numbers=(((1,), (0,)), ((), ())),
        preferred_element_type=jnp.float32)                    # (Cout, tm)
    o_ref[...] = (y + shift_ref[...]).astype(o_ref.dtype)


def postactivated_shortcut(x, w, gamma, beta, temporal_stride, spatial_stride,
                           bn_eps=1e-5, tile_m=32768):
    """x: (N, Cin, T, H, W) f32, w: (Cout, Cin), gamma/beta: (Cout,)."""
    assert tile_m % 128 == 0
    N, Cin, T, H, W = x.shape
    Cout = w.shape[0]

    # stride of a kernel_size=1, padding=0 conv == pure subsampling
    xs = x[:, :, ::temporal_stride, ::spatial_stride, ::spatial_stride]
    To, Ho, Wo = xs.shape[2], xs.shape[3], xs.shape[4]
    M = N * To * Ho * Wo

    # channels-on-sublane / voxels-on-lane layout (leading-axis swap only)
    xT = jnp.transpose(xs, (1, 0, 2, 3, 4)).reshape(Cin, M).astype(jnp.float32)

    # large lane tiles; zero-pad the tail (zeros contribute 0 to the stats)
    tm = _choose_tile_m(M, Cin, Cout, tile_m)
    M_pad = _round_up(M, tm)
    if M_pad != M:
        xT = jnp.pad(xT, ((0, 0), (0, M_pad - M)))
    grid_m = M_pad // tm

    w32 = w.astype(jnp.float32)
    cparams = pltpu.CompilerParams(
        dimension_semantics=("parallel",),
        vmem_limit_bytes=32 * 1024 * 1024)

    # ---- pass 1: per-channel batch statistics (y never materialized) ----
    sx_p, sxx_p = pl.pallas_call(
        _stats_kernel,
        out_shape=(jax.ShapeDtypeStruct((grid_m, 1, Cin), jnp.float32),
                   jax.ShapeDtypeStruct((grid_m, Cin, Cin), jnp.float32)),
        grid_spec=pltpu.PrefetchScalarGridSpec(
            num_scalar_prefetch=0,
            grid=(grid_m,),
            in_specs=[pl.BlockSpec((Cin, tm), lambda i: (0, i))],
            out_specs=[
                pl.BlockSpec((1, 1, Cin), lambda i: (i, 0, 0)),
                pl.BlockSpec((1, Cin, Cin), lambda i: (i, 0, 0)),
            ]),
        compiler_params=cparams,
    )(xT)

    # training-mode BatchNorm3d: biased batch statistics over (N, T, H, W)
    sx = jnp.sum(sx_p, axis=(0, 1))                      # (Cin,)
    sxx = jnp.sum(sxx_p, axis=0)                         # (Cin, Cin)
    sum_y = w32 @ sx                                     # (Cout,)
    sq_y = jnp.sum((w32 @ sxx) * w32, axis=1)            # diag(W Sxx W^T)
    mean = sum_y / M
    var = sq_y / M - mean * mean
    scale = gamma.astype(jnp.float32) * lax.rsqrt(var + bn_eps)
    shift = beta.astype(jnp.float32) - mean * scale

    # fold BN scale into the conv weight -> single matmul+bias pass
    w_scaled = scale[:, None] * w32                      # (Cout, Cin)
    shift2d = shift[:, None]                             # (Cout, 1)

    # ---- pass 2: fused conv + batchnorm elementwise ----
    o2d = pl.pallas_call(
        _conv_bn_kernel,
        out_shape=jax.ShapeDtypeStruct((Cout, M_pad), jnp.float32),
        grid_spec=pltpu.PrefetchScalarGridSpec(
            num_scalar_prefetch=0,
            grid=(grid_m,),
            in_specs=[
                pl.BlockSpec((Cin, tm), lambda i: (0, i)),
                pl.BlockSpec((Cout, Cin), lambda i: (0, 0)),
                pl.BlockSpec((Cout, 1), lambda i: (0, 0)),
            ],
            out_specs=pl.BlockSpec((Cout, tm), lambda i: (0, i))),
        compiler_params=cparams,
    )(xT, w_scaled, shift2d)

    # back to PyTorch NCTHW layout (leading-axis swap only)
    o2d = o2d[:, :M]
    out = o2d.reshape(Cout, N, To, Ho, Wo).transpose(1, 0, 2, 3, 4)
    # TODO(synk): BatchNorm running_mean/var momentum update (module state
    # side-effect, does not affect the forward output) is not implemented.
    return out


def _reference(x, w, gamma, beta, ts, ss, bn_eps=1e-5):
    xs = x[:, :, ::ts, ::ss, ::ss]
    y = jnp.einsum('ncthw,oc->nothw', xs, w)
    mean = y.mean(axis=(0, 2, 3, 4), keepdims=True)
    var = ((y - mean) ** 2).mean(axis=(0, 2, 3, 4), keepdims=True)  # biased
    yhat = (y - mean) * lax.rsqrt(var + bn_eps)
    return yhat * gamma[None, :, None, None, None] + beta[None, :, None, None, None]


if __name__ == "__main__":
    # Module config consistent with the asserts in __init__
    dim_in, dim_out = 4, 8
    temporal_stride, spatial_stride = 2, 2
    N, T, H, W = 2, 6, 18, 18          # -> M = 2*3*9*9 = 486 (exercises padding)

    key = jax.random.PRNGKey(0)
    kx, kw, kg, kb = jax.random.split(key, 4)
    x = jax.random.normal(kx, (N, dim_in, T, H, W), dtype=jnp.float32)

    # Conv3d default init: U(-1/sqrt(fan_in), 1/sqrt(fan_in)), fan_in = dim_in
    bound = 1.0 / jnp.sqrt(float(dim_in))
    w = jax.random.uniform(kw, (dim_out, dim_in), minval=-bound, maxval=bound,
                           dtype=jnp.float32)
    # non-trivial affine params to exercise the scale/shift fold
    gamma = 1.0 + 0.1 * jax.random.normal(kg, (dim_out,), dtype=jnp.float32)
    beta = 0.1 * jax.random.normal(kb, (dim_out,), dtype=jnp.float32)

    # small tile_m so the test exercises multi-block tiling + partial-sum reduce
    out = postactivated_shortcut(x, w, gamma, beta,
                                 temporal_stride, spatial_stride,
                                 tile_m=256)
    out = jax.block_until_ready(out)

    ref = _reference(x, w, gamma, beta, temporal_stride, spatial_stride)
    assert out.shape == ref.shape, (out.shape, ref.shape)
    assert jnp.allclose(out, ref, atol=1e-4, rtol=1e-4), "mismatch vs reference"

    print("KERNEL_OK")
</pallas_src>

<mosaic_0001>
module attributes {stable_mosaic.version = 11 : i64} {
  func.func @_stats_kernel(%arg0: i32, %arg1: memref<4x256xf32, #tpu.memory_space<vmem>>, %arg2: memref<1x1x4xf32, #tpu.memory_space<vmem>>, %arg3: memref<1x4x4xf32, #tpu.memory_space<vmem>>) attributes {dimension_semantics = [#tpu.dimension_semantics<parallel>], iteration_bounds = array<i64: 2>, scalar_prefetch = 0 : i64, scratch_operands = 0 : i64, tpu.core_type = #tpu.core_type<tc>, window_params = [{transform_indices = @transform_0, window_bounds = array<i64: 4, 256>}, {transform_indices = @transform_1, window_bounds = array<i64: 1, 1, 4>}, {transform_indices = @transform_2, window_bounds = array<i64: 1, 4, 4>}]} {
    %c0 = arith.constant 0 : index
    %c0_0 = arith.constant 0 : index
    %0 = vector.load %arg1[%c0, %c0_0] : memref<4x256xf32, #tpu.memory_space<vmem>>, vector<4x256xf32>
    %cst = arith.constant dense<0.000000e+00> : vector<4xf32>
    %1 = vector.multi_reduction <add>, %0, %cst [1] : vector<4x256xf32> to vector<4xf32>
    %2 = vector.shape_cast %1 : vector<4xf32> to vector<1x1x4xf32>
    %c0_1 = arith.constant 0 : index
    %c0_2 = arith.constant 0 : index
    %c0_3 = arith.constant 0 : index
    %3 = vector.load %arg2[%c0_1, %c0_2, %c0_3] : memref<1x1x4xf32, #tpu.memory_space<vmem>>, vector<1x1x4xf32>
    tpu.vector_store %arg2[%c0_1, %c0_2, %c0_3], %2 {strides = array<i32>} : memref<1x1x4xf32, #tpu.memory_space<vmem>>, vector<1x1x4xf32>,
    %cst_4 = arith.constant dense<0.000000e+00> : vector<4x4xf32>
    %4 = tpu.matmul %0, %0, %cst_4 {dimension_numbers = #tpu.dot_dimension_numbers<[1], [1], [0], [0], [0, 0, 1, 0], [], []>} : vector<4x256xf32>, vector<4x256xf32>, vector<4x4xf32> -> vector<4x4xf32>
    %5 = vector.shape_cast %4 : vector<4x4xf32> to vector<1x4x4xf32>
    %c0_5 = arith.constant 0 : index
    %c0_6 = arith.constant 0 : index
    %c0_7 = arith.constant 0 : index
    %6 = vector.load %arg3[%c0_5, %c0_6, %c0_7] : memref<1x4x4xf32, #tpu.memory_space<vmem>>, vector<1x4x4xf32>
    tpu.vector_store %arg3[%c0_5, %c0_6, %c0_7], %5 {strides = array<i32>} : memref<1x4x4xf32, #tpu.memory_space<vmem>>, vector<1x4x4xf32>,
    return
  }
  func.func @transform_0(%arg0: i32) -> (i32, i32) {
    %c0_i32 = arith.constant 0 : i32
    %c0_i32_0 = arith.constant 0 : i32
    return %c0_i32, %arg0 : i32, i32
  }
  func.func @transform_1(%arg0: i32) -> (i32, i32, i32) {
    %c0_i32 = arith.constant 0 : i32
    %c0_i32_0 = arith.constant 0 : i32
    %c0_i32_1 = arith.constant 0 : i32
    return %arg0, %c0_i32, %c0_i32_0 : i32, i32, i32
  }
  func.func @transform_2(%arg0: i32) -> (i32, i32, i32) {
    %c0_i32 = arith.constant 0 : i32
    %c0_i32_0 = arith.constant 0 : i32
    %c0_i32_1 = arith.constant 0 : i32
    return %arg0, %c0_i32, %c0_i32_0 : i32, i32, i32
  }
}

</mosaic_0001>

<llo_original>
// kernel: tpu_custom_call.1
$region0: #{tpu_custom_call.1}
  #allocation0 [shape = 'u32[]', space=smem, size = 0x4, offset = 0x4, fixed_abs, tag = 'smem constant byte address 0x4 - core index']
  #allocation1 [shape = 'u32[72,128]{1,0:T(1,128)}', space=vmem, size = 0x9000, scoped, tag = 'internal scratch']
  %s0 = inlined_call_operand.hbm [shape: f32[4,512], index: 0, kind: input, shape index: {}]
  %s1 = inlined_call_operand.hbm [shape: f32[2,1,4], index: 1, kind: output, shape index: {0}]
  %s2 = inlined_call_operand.hbm [shape: f32[2,4,4], index: 2, kind: output, shape index: {1}]
  %3 = xla_tuple %s1, %s2
  %s4 = sld [smem:[#allocation0]]
  $region49: #{tpu_custom_call.1} parent=0
    _
  %s6 = ssub.s32 1, %s4
  %s7 = scalar_select 0, %s6, %s4
  $region1: #{tpu_custom_call.1} parent=0
    #allocation2 [shape = 'u8[8192]{0}', space=vmem, size = 0x2000, scoped, tag = 'input window, operand 0']
    #allocation3 [shape = 's32[2]{0}', space=sflag, size = 0x8, scoped, tag = 'scoped memory for tpu_custom_call.1']
    #allocation4 [shape = 's32[2]{0}', space=sflag, size = 0x8, scoped, tag = 'scoped memory for tpu_custom_call.1']
    #allocation5 [shape = 'u8[1024]{0}', space=vmem, size = 0x400, scoped, tag = 'output window, operand 0']
    #allocation6 [shape = 'u8[4096]{0}', space=vmem, size = 0x1000, scoped, tag = 'output window, operand 1']
    #allocation7 [shape = 's32[2]{0}', space=sflag, size = 0x8, scoped, tag = 'scoped memory for tpu_custom_call.1']
    %8 = vsyncpa [#allocation3], 0
    %s9 = scalar_lea.sflag [#allocation3], 1
    %10 = vsyncpa %s9, 0
    %11 = vsyncpa [#allocation4], 0
    %s12 = scalar_lea.sflag [#allocation4], 1
    %13 = vsyncpa %s12, 0
    %14 = vsyncpa [#allocation7], 0
    %s15 = scalar_lea.sflag [#allocation7], 1
    %16 = vsyncpa %s15, 0
    loop: start=0, step=1, limit=4
    $region2: #{tpu_custom_call.1} parent=1 // loop_pre_header
      _
    $region3: #{tpu_custom_call.1} parent=1 // loop_header
      %s18 = sphi 0, %s22
      %p19 = scmp.ge.s32.totalorder %s18, 4
      %s28 = sphi 0, %s30
      %s31 = sphi 0, %s28
      %s32 = sphi 0, %s31
      %s48 = sphi 0, %s32
      %s54 = sphi 0, %s56
      %s57 = sphi 0, %s54
      %s58 = sphi 0, %s57
      %s74 = sphi 0, %s58
      %s80 = sphi 0, %s82
      %s83 = sphi 0, %s80
      %s84 = sphi 0, %s83
      %s100 = sphi 0, %s84
    $region4: #{tpu_custom_call.1} parent=1 // loop_header_branch
      %21 = sbr.rel (%p19) target = $region8
    $region5: #{tpu_custom_call.1} parent=1 // loop_body
      %s23 = ssub.s32 %s18, 1
      %s24 = ssub.s32 %s18, 2
      %s25 = sadd.s32 %s18, 1
      %s26 = ssub.s32 %s18, %s25
      %p27 = scmp.eq.s32.totalorder %s26, 0
      %s29 = sadd.s32 %s28, 1
      %s30 = scalar_select %p27, %s28, %s29
      %p33 = pneg %p27
      %p34 = scmp.eq.s32.totalorder %s18, 1
      %p35 = por %p33, %p34
      %p36 = scmp.ne.s32.totalorder %s28, %s31
      %p37 = scmp.eq.s32.totalorder %s18, 0
      %p38 = por %p36, %p37
      %p39 = scmp.ne.s32.totalorder %s28, %s31
      %p40 = scmp.eq.s32.totalorder %s23, 1
      %p41 = por %p39, %p40
      %p42 = scmp.ne.s32.totalorder %s31, %s32
      %p43 = scmp.eq.s32.totalorder %s23, 0
      %p44 = por %p42, %p43
      %p45 = scmp.ne.s32.totalorder %s31, %s32
      %p46 = scmp.eq.s32.totalorder %s24, 1
      %p47 = por %p45, %p46
      %p49 = scmp.ne.s32.totalorder %s32, %s48
      %p50 = scmp.eq.s32.totalorder %s24, 0
      %p51 = por %p49, %p50
      %s52 = ssub.s32 %s18, %s25
      %p53 = scmp.eq.s32.totalorder %s52, 0
      %s55 = sadd.s32 %s54, 1
      %s56 = scalar_select %p53, %s54, %s55
      %p59 = pneg %p53
      %p60 = scmp.eq.s32.totalorder %s18, 1
      %p61 = por %p59, %p60
      %p62 = scmp.ne.s32.totalorder %s54, %s57
      %p63 = scmp.eq.s32.totalorder %s18, 0
      %p64 = por %p62, %p63
      %p65 = scmp.ne.s32.totalorder %s54, %s57
      %p66 = scmp.eq.s32.totalorder %s23, 1
      %p67 = por %p65, %p66
      %p68 = scmp.ne.s32.totalorder %s57, %s58
      %p69 = scmp.eq.s32.totalorder %s23, 0
      %p70 = por %p68, %p69
      %p71 = scmp.ne.s32.totalorder %s57, %s58
      %p72 = scmp.eq.s32.totalorder %s24, 1
      %p73 = por %p71, %p72
      %p75 = scmp.ne.s32.totalorder %s58, %s74
      %p76 = scmp.eq.s32.totalorder %s24, 0
      %p77 = por %p75, %p76
      %s78 = ssub.s32 %s18, %s25
      %p79 = scmp.eq.s32.totalorder %s78, 0
      %s81 = sadd.s32 %s80, 1
      %s82 = scalar_select %p79, %s80, %s81
      %p85 = pneg %p79
      %p86 = scmp.eq.s32.totalorder %s18, 1
      %p87 = por %p85, %p86
      %p88 = scmp.ne.s32.totalorder %s80, %s83
      %p89 = scmp.eq.s32.totalorder %s18, 0
      %p90 = por %p88, %p89
      %p91 = scmp.ne.s32.totalorder %s80, %s83
      %p92 = scmp.eq.s32.totalorder %s23, 1
      %p93 = por %p91, %p92
      %p94 = scmp.ne.s32.totalorder %s83, %s84
      %p95 = scmp.eq.s32.totalorder %s23, 0
      %p96 = por %p94, %p95
      %p97 = scmp.ne.s32.totalorder %s83, %s84
      %p98 = scmp.eq.s32.totalorder %s24, 1
      %p99 = por %p97, %p98
      %p101 = scmp.ne.s32.totalorder %s84, %s100
      %p102 = scmp.eq.s32.totalorder %s24, 0
      %p103 = por %p101, %p102
      %p104 = scmp.le.s32.totalorder 1, %s18
      %p105 = scmp.lt.s32.totalorder %s18, 3
      %p106 = pnand %p104, %p105
      %p107 = pneg %p106
      // Predicated region
      $region9: #{tpu_custom_call.1} parent=5 // pred_check
        _
      $region10: #{tpu_custom_call.1} parent=5 // pred_check_branch
        %109 = sbr.rel (%p106) target = $region12
      $region11: #{tpu_custom_call.1} parent=5 // pred_region
        %s110 = ssub.s32 %s18, 1
      $region12: #{tpu_custom_call.1} parent=5 // pred_fallthru
        _
      %p111 = scmp.lt.s32.totalorder %s18, 2
      // Predicated region
      $region13: #{tpu_custom_call.1} parent=5 // pred_check
        %p112 = pneg %p111
      $region14: #{tpu_custom_call.1} parent=5 // pred_check_branch
        %114 = sbr.rel (%p112) target = $region16
      $region15: #{tpu_custom_call.1} parent=5 // pred_region
        // Predicated region
        $region17: #{tpu_custom_call.1} parent=15 // pred_check
          %p115 = pneg %p38
        $region18: #{tpu_custom_call.1} parent=15 // pred_check_branch
          %117 = sbr.rel (%p115) target = $region20
        $region19: #{tpu_custom_call.1} parent=15 // pred_region
          %s118 = sand.u32 %s28, 1
          %s119 = scalar_lea.sflag [#allocation3], %s118
          %s120 = sand.u32 %s28, 1
          %s121 = smul.addr %s120, 8
          %s122 = scalar_lea.vmem [#allocation2], %s121
          %s123 = smul.u32 2, %s18
          %125 = vsyncadd %s119, 0
          %s126 = smul.addr %s123, 4
          %s127 = scalar_lea.hbm %s0, %s126
          %s129 = sshll.u32 %s127, 4
          %s130 = int_to_ptr.hbm [resolvable:$true] %s129
          %s131 = sshll.u32 %s122, 4
          %s132 = int_to_ptr.vmem [resolvable:$true] %s131
          %134 = dma.hbm_to_vmem [thread:$0]  %s130, 128, %s132, %s119
        $region20: #{tpu_custom_call.1} parent=15 // pred_fallthru
          _
      $region16: #{tpu_custom_call.1} parent=5 // pred_fallthru
        _
      %p135 = scmp.le.s32.totalorder 1, %s18
      %p136 = scmp.lt.s32.totalorder %s18, 3
      %p137 = pnand %p135, %p136
      %p138 = pneg %p137
      // Predicated region
      $region21: #{tpu_custom_call.1} parent=5 // pred_check
        _
      $region22: #{tpu_custom_call.1} parent=5 // pred_check_branch
        %140 = sbr.rel (%p137) target = $region24
      $region23: #{tpu_custom_call.1} parent=5 // pred_region
        %s141 = ssub.s32 %s18, 1
        %s142 = sand.u32 %s31, 1
        %s143 = scalar_lea.sflag [#allocation3], %s142
        %s144 = sand.u32 %s31, 1
        %s145 = smul.addr %s144, 8
        %s146 = scalar_lea.vmem [#allocation2], %s145
        // Predicated region
        $region25: #{tpu_custom_call.1} parent=23 // pred_check
          %p147 = pneg %p44
        $region26: #{tpu_custom_call.1} parent=23 // pred_check_branch
          %149 = sbr.rel (%p147) target = $region28
        $region27: #{tpu_custom_call.1} parent=23 // pred_region
          %151 = dma.done %s143, 128
        $region28: #{tpu_custom_call.1} parent=23 // pred_fallthru
          _
        %s152 = sand.u32 %s31, 1
        %s153 = scalar_lea.sflag [#allocation3], %s152
        %s154 = sand.u32 %s31, 1
        %s155 = smul.addr %s154, 8
        %s156 = scalar_lea.vmem [#allocation2], %s155
        %p157 = pneg %p44
        %p158 = pneg %p41
        %p159 = pneg %p70
        %p160 = pneg %p67
        %s161 = sand.u32 %s57, 1
        %s162 = scalar_lea.sflag [#allocation4], %s161
        %s163 = sand.u32 %s57, 1
        %s164 = scalar_lea.vmem [#allocation5], %s163
        %p165 = pneg %p96
        %p166 = pneg %p93
        %s167 = sand.u32 %s83, 1
        %s168 = scalar_lea.sflag [#allocation7], %s167
        %s169 = sand.u32 %s83, 1
        %s170 = smul.addr %s169, 4
        %s171 = scalar_lea.vmem [#allocation6], %s170
        %s172 = smul.u32 2, %s23
        %v173 = vld [vmem:[%s146] sm:$0xff]
        %175 = vst [vmem:[#allocation1] ss:$2 sm:$0xff] %v173
        %v176 = vld.sshfl [vmem:[#allocation1] sm:$0xff pattern:$0x75316420]
        %v177 = vld.sshfl [vmem:[#allocation1 + $0x8] sm:$0xff pattern:$0x75316420]
        %vm180 = vcmask 1043456
        %v181 = vsel %vm180, %v176, 0.0
        %v182 = vsel %vm180, %v177, 0.0
        %v183 = vadd.f32 %v181, %v182
        %184 = vadd.xlane.f32.xlu0 %v183
        %v185 = vpop.xlane.xlu0 %184
        %v187 = vlaneseq
        %v188 = vand.u32 %v187, 127
        %v189 = vperm.slane %v185, %v188
        %vm191 = vcmask 24576
        %192 = vst.msk [vmem:[%s164] sm:$0x1] %vm191, %v189
        %193 = vst [vmem:[#allocation1] ss:$2 sm:$0xff] %v173
        %v194 = vld.sshfl [vmem:[#allocation1] sm:$0xff pattern:$0x75316420]
        %v195 = vld.sshfl [vmem:[#allocation1 + $0x8] sm:$0xff pattern:$0x75316420]
        %198 = vst [vmem:[#allocation1] ss:$2 sm:$0xff] %v173
        %v199 = vld.sshfl [vmem:[#allocation1] sm:$0xff pattern:$0x75316420]
        %v200 = vld.sshfl [vmem:[#allocation1 + $0x8] sm:$0xff pattern:$0x75316420]
        %203 = vmatpush.xpose.msra.mxu0 0.0
        %204 = vmatpush.xpose.msra.mxu0 0.0
        %205 = vmatpush.xpose.msra.mxu0 0.0
        %206 = vmatpush.xpose.msra.mxu0 0.0
        %207 = vmatpush.xpose.msra.mxu0 0.0
        %208 = vmatpush.xpose.msra.mxu0 0.0
        %209 = vmatpush.xpose.msra.mxu0 0.0
        %210 = vmatpush.xpose.msra.mxu0 0.0
        %211 = vmatpush.xpose.msra.mxu0 0.0
        %212 = vmatpush.xpose.msra.mxu0 0.0
        %213 = vmatpush.xpose.msra.mxu0 0.0
        %214 = vmatpush.xpose.msra.mxu0 0.0
        %215 = vmatpush.xpose.msra.mxu0 0.0
        %216 = vmatpush.xpose.msra.mxu0 0.0
        %217 = vmatpush.xpose.msra.mxu0 0.0
        %218 = vmatpush.xpose.msra.mxu0 %v199
        %219 = vmatmul.f32.gmra.mxu0 %v194
        %v220 = vpop.f32.mrf.mxu0
        %v221 = vadd.f32 0.0, %v220
        %222 = vdwg.mxu0
        %223 = vmatpush.xpose.msra.mxu0 0.0
        %224 = vmatpush.xpose.msra.mxu0 0.0
        %225 = vmatpush.xpose.msra.mxu0 0.0
        %226 = vmatpush.xpose.msra.mxu0 0.0
        %227 = vmatpush.xpose.msra.mxu0 0.0
        %228 = vmatpush.xpose.msra.mxu0 0.0
        %229 = vmatpush.xpose.msra.mxu0 0.0
        %230 = vmatpush.xpose.msra.mxu0 0.0
        %231 = vmatpush.xpose.msra.mxu0 0.0
        %232 = vmatpush.xpose.msra.mxu0 0.0
        %233 = vmatpush.xpose.msra.mxu0 0.0
        %234 = vmatpush.xpose.msra.mxu0 0.0
        %235 = vmatpush.xpose.msra.mxu0 0.0
        %236 = vmatpush.xpose.msra.mxu0 0.0
        %237 = vmatpush.xpose.msra.mxu0 0.0
        %238 = vmatpush.xpose.msra.mxu0 %v200
        %239 = vmatmul.f32.gmra.mxu0 %v195
        %v240 = vpop.f32.mrf.mxu0
        %v241 = vadd.f32 %v221, %v240
        %242 = vdwg.mxu0
        %vm243 = vcmask 27648
        %244 = vst.msk [vmem:[%s171] sm:$0xf] %vm243, %v241
        %s245 = sand.u32 %s57, 1
        %s246 = scalar_lea.sflag [#allocation4], %s245
        %s247 = sand.u32 %s57, 1
        %s248 = scalar_lea.vmem [#allocation5], %s247
        %s249 = sand.u32 %s83, 1
        %s250 = scalar_lea.sflag [#allocation7], %s249
        %s251 = sand.u32 %s83, 1
        %s252 = smul.addr %s251, 4
        %s253 = scalar_lea.vmem [#allocation6], %s252
        // Predicated region
        $region29: #{tpu_custom_call.1} parent=23 // pred_check
          %p254 = pneg %p67
        $region30: #{tpu_custom_call.1} parent=23 // pred_check_branch
          %256 = sbr.rel (%p254) target = $region32
        $region31: #{tpu_custom_call.1} parent=23 // pred_region
          %258 = vsyncadd %s246, 0
          %s259 = scalar_lea.hbm %s1, %s23
          %s261 = sshll.u32 %s248, 4
          %s262 = int_to_ptr.vmem [resolvable:$true] %s261
          %s263 = sshll.u32 %s259, 4
          %s264 = int_to_ptr.hbm [resolvable:$true] %s263
          %266 = dma.vmem_to_hbm [thread:$0]  %s262, 16, %s264, %s246
        $region32: #{tpu_custom_call.1} parent=23 // pred_fallthru
          _
        // Predicated region
        $region33: #{tpu_custom_call.1} parent=23 // pred_check
          %p267 = pneg %p93
        $region34: #{tpu_custom_call.1} parent=23 // pred_check_branch
          %269 = sbr.rel (%p267) target = $region36
        $region35: #{tpu_custom_call.1} parent=23 // pred_region
          %271 = vsyncadd %s250, 0
          %s272 = smul.addr %s23, 4
          %s273 = scalar_lea.hbm %s2, %s272
          %s275 = sshll.u32 %s253, 4
          %s276 = int_to_ptr.vmem [resolvable:$true] %s275
          %s277 = sshll.u32 %s273, 4
          %s278 = int_to_ptr.hbm [resolvable:$true] %s277
          %280 = dma.vmem_to_hbm [thread:$0]  %s276, 64, %s278, %s250
        $region36: #{tpu_custom_call.1} parent=23 // pred_fallthru
          _
      $region24: #{tpu_custom_call.1} parent=5 // pred_fallthru
        _
      %p281 = scmp.le.s32.totalorder 2, %s18
      // Predicated region
      $region37: #{tpu_custom_call.1} parent=5 // pred_check
        %p282 = pneg %p281
      $region38: #{tpu_custom_call.1} parent=5 // pred_check_branch
        %284 = sbr.rel (%p282) target = $region40
      $region39: #{tpu_custom_call.1} parent=5 // pred_region
        %s285 = ssub.s32 %s18, 2
        // Predicated region
        $region41: #{tpu_custom_call.1} parent=39 // pred_check
          %p286 = pneg %p73
        $region42: #{tpu_custom_call.1} parent=39 // pred_check_branch
          %288 = sbr.rel (%p286) target = $region44
        $region43: #{tpu_custom_call.1} parent=39 // pred_region
          %s289 = sand.u32 %s58, 1
          %s290 = scalar_lea.sflag [#allocation4], %s289
          %s291 = sand.u32 %s58, 1
          %s292 = scalar_lea.vmem [#allocation5], %s291
          %294 = dma.done %s290, 16
        $region44: #{tpu_custom_call.1} parent=39 // pred_fallthru
          _
        // Predicated region
        $region45: #{tpu_custom_call.1} parent=39 // pred_check
          %p295 = pneg %p99
        $region46: #{tpu_custom_call.1} parent=39 // pred_check_branch
          %297 = sbr.rel (%p295) target = $region48
        $region47: #{tpu_custom_call.1} parent=39 // pred_region
          %s298 = sand.u32 %s84, 1
          %s299 = scalar_lea.sflag [#allocation7], %s298
          %s300 = sand.u32 %s84, 1
          %s301 = smul.addr %s300, 4
          %s302 = scalar_lea.vmem [#allocation6], %s301
          %304 = dma.done %s299, 64
        $region48: #{tpu_custom_call.1} parent=39 // pred_fallthru
          _
      $region40: #{tpu_custom_call.1} parent=5 // pred_fallthru
        _
    $region6: #{tpu_custom_call.1} parent=1 // loop_footer
      %s22 = sadd.s32 1, %s18
    $region7: #{tpu_custom_call.1} parent=1 // loop_footer_branch
      %17 = sbr.rel target = $region3
    $region8: #{tpu_custom_call.1} parent=1 // loop_exit
      _
    %305 = vsyncpa [#allocation3], 1
    %s306 = scalar_lea.sflag [#allocation3], 1
    %307 = vsyncpa %s306, 1
    %308 = vsyncpa [#allocation4], 1
    %s309 = scalar_lea.sflag [#allocation4], 1
    %310 = vsyncpa %s309, 1
    %311 = vsyncpa [#allocation7], 1
    %s312 = scalar_lea.sflag [#allocation7], 1
    %313 = vsyncpa %s312, 1

</llo_original>
